<compile_context>
chip_gen: v7x
topology: tpu7x:2x2x1
jax: 0.10.0
libtpu: 0.0.40
codegen_flags: <defaults>
</compile_context>

<pallas_src>
import jax
import jax.numpy as jnp
from jax import lax
from jax.experimental import pallas as pl
from jax.experimental.pallas import tpu as pltpu


def _round_up(x, m):
    return (x + m - 1) // m * m


def coembed_cosine_kernel(d_ref, t_ref, wd_ref, wt_ref, bd_ref, bt_ref, out_ref):
    # Two MXU passes (one per projector): (L, D) . (TB, D)^T -> (L, TB), f32 acc.
    m = lax.dot_general(
        wd_ref[...], d_ref[...],
        dimension_numbers=(((1,), (1,)), ((), ())),
        preferred_element_type=jnp.float32,
    )
    p = lax.dot_general(
        wt_ref[...], t_ref[...],
        dimension_numbers=(((1,), (1,)), ((), ())),
        preferred_element_type=jnp.float32,
    )
    # f32 epilogue: bias + ReLU (padded latent rows have zero weight/bias -> 0).
    m = jnp.maximum(m + bd_ref[...], 0.0)
    p = jnp.maximum(p + bt_ref[...], 0.0)

    # Sublane reductions -> lane-dense (1, TB) rows.
    # (If profiling ever shows the XLU/VALU binding, these three reductions can
    #  be moved to the MXU via ones(1, L) @ (m*p) etc. — not needed by default.)
    dot = jnp.sum(m * p, axis=0, keepdims=True)
    nm2 = jnp.sum(m * m, axis=0, keepdims=True)
    np2 = jnp.sum(p * p, axis=0, keepdims=True)

    # cos = dot / max(|m|*|p|, 1e-8) == dot * rsqrt(max(|m|^2*|p|^2, 1e-16)).
    # rsqrt lowers to the EUP (its own VLIW slot), off the VALU path.
    out_ref[...] = dot * lax.rsqrt(jnp.maximum(nm2 * np2, 1e-16))


def simple_coembedding(drug, target, wd, bd, wt, bt, *,
                       batch_tile=2048, compute_dtype=jnp.bfloat16):
    """ReLU-projected cosine similarity (SimpleCoembedding.classify), fused.

    drug:   (B, Dd)    wd: (Dd, L)   bd: (L,)
    target: (B, Dt)    wt: (Dt, L)   bt: (L,)
    returns (B,) float32
    """
    B, Dd = drug.shape
    Dt = target.shape[1]
    L = wd.shape[1]
    Lp = _round_up(L, 8)                    # sublane-align the latent dim
    f32 = jnp.float32
    in_bytes = jnp.dtype(compute_dtype).itemsize

    # Streamed embeddings + weights in bf16 (f32 accumulation / epilogue).
    drug_c = drug.astype(compute_dtype)
    target_c = target.astype(compute_dtype)

    # Transposed weights (L, D) so the kernel computes proj^T directly; padded
    # latent rows carry zero weight and zero bias -> ReLU(0) = 0 -> no effect.
    wd_t = jnp.zeros((Lp, Dd), compute_dtype).at[:L, :].set(wd.T.astype(compute_dtype))
    wt_t = jnp.zeros((Lp, Dt), compute_dtype).at[:L, :].set(wt.T.astype(compute_dtype))
    bd_col = jnp.zeros((Lp, 1), f32).at[:L, 0].set(bd.reshape(-1).astype(f32))
    bt_col = jnp.zeros((Lp, 1), f32).at[:L, 0].set(bt.reshape(-1).astype(f32))

    # --- batch tiling --------------------------------------------------------
    # Lane-align the batch (pad only when needed; a no-op at production batch
    # sizes, and it keeps every output block unmasked / lane-dense).
    B128 = _round_up(max(B, 1), 128)
    if B128 != B:
        drug_c = jnp.pad(drug_c, ((0, B128 - B), (0, 0)))
        target_c = jnp.pad(target_c, ((0, B128 - B), (0, 0)))

    TB = min(_round_up(batch_tile, 128), B128)
    # v7x: keep >= 2 grid steps so the "parallel" batch axis feeds both TCs.
    if B128 // TB < 2 and B128 >= 256:
        TB = _round_up(B128 // 2, 128)
    # Clamp TB so double-buffered input tiles + f32 intermediates + resident
    # weights stay within a conservative VMEM budget (fits v7x's 64 MiB).
    budget = 40 * 1024 * 1024
    per_row = 2 * (Dd + Dt) * in_bytes + 2 * Lp * 4 + 2 * 4
    fixed = Lp * (Dd + Dt) * in_bytes + 2 * Lp * 4
    max_tb = max(128, (budget - fixed) // per_row // 128 * 128)
    TB = min(TB, max_tb)

    grid = (pl.cdiv(B128, TB),)
    Bout = grid[0] * TB                     # last block may be a partial edge block

    compiler_kwargs = dict(dimension_semantics=("parallel",))
    vmem_est = fixed + per_row * TB
    if vmem_est > 14 * 1024 * 1024:         # above v5e's default scoped limit
        compiler_kwargs["vmem_limit_bytes"] = int(min(vmem_est + (8 << 20),
                                                      64 * 1024 * 1024))

    cost = pl.CostEstimate(
        flops=2 * Bout * (Dd + Dt) * Lp + 8 * Bout * Lp,
        transcendentals=Bout,
        bytes_accessed=(B128 * (Dd + Dt) + Lp * (Dd + Dt)) * in_bytes
        + 4 * (2 * Lp + Bout),
    )

    out = pl.pallas_call(
        coembed_cosine_kernel,
        out_shape=jax.ShapeDtypeStruct((1, Bout), f32),
        grid=grid,
        in_specs=[
            pl.BlockSpec((TB, Dd), lambda i: (i, 0)),   # drug rows   (streamed)
            pl.BlockSpec((TB, Dt), lambda i: (i, 0)),   # target rows (streamed)
            pl.BlockSpec((Lp, Dd), lambda i: (0, 0)),   # Wd^T        (resident)
            pl.BlockSpec((Lp, Dt), lambda i: (0, 0)),   # Wt^T        (resident)
            pl.BlockSpec((Lp, 1), lambda i: (0, 0)),    # bd          (resident)
            pl.BlockSpec((Lp, 1), lambda i: (0, 0)),    # bt          (resident)
        ],
        out_specs=pl.BlockSpec((1, TB), lambda i: (0, i)),  # lane-dense slab
        compiler_params=pltpu.CompilerParams(**compiler_kwargs),
        cost_estimate=cost,
    )(drug_c, target_c, wd_t, wt_t, bd_col, bt_col)

    return out[0, :B]


def reference(drug, target, wd, bd, wt, bt, eps=1e-8):
    m = jnp.maximum(drug @ wd + bd, 0.0)
    p = jnp.maximum(target @ wt + bt, 0.0)
    dot = jnp.sum(m * p, axis=-1)
    nm = jnp.sqrt(jnp.sum(m * m, axis=-1))
    npn = jnp.sqrt(jnp.sum(p * p, axis=-1))
    return dot / (jnp.maximum(nm, eps) * jnp.maximum(npn, eps))


if __name__ == "__main__":
    # Small shapes consistent with SimpleCoembedding: batch=8, drug=32,
    # target=16, latent=64.
    B, DRUG, TARGET, LATENT = 8, 32, 16, 64

    key = jax.random.PRNGKey(0)
    k1, k2, k3, k4, k5, k6 = jax.random.split(key, 6)

    drug = jax.random.normal(k1, (B, DRUG), dtype=jnp.float32)
    target = jax.random.normal(k2, (B, TARGET), dtype=jnp.float32)

    # Linear weights stored as (in, out) for x @ W + b (xavier-normal scale).
    wd = jax.random.normal(k3, (DRUG, LATENT), dtype=jnp.float32) / jnp.sqrt(DRUG + LATENT)
    bd = jax.random.normal(k4, (LATENT,), dtype=jnp.float32) * 0.01
    wt = jax.random.normal(k5, (TARGET, LATENT), dtype=jnp.float32) / jnp.sqrt(TARGET + LATENT)
    bt = jax.random.normal(k6, (LATENT,), dtype=jnp.float32) * 0.01

    out = jax.block_until_ready(simple_coembedding(drug, target, wd, bd, wt, bt))
    assert out.shape == (B,)

    # Tight check vs a reference fed the same bf16-rounded inputs.
    bf = jnp.bfloat16
    ref_q = reference(drug.astype(bf).astype(jnp.float32),
                      target.astype(bf).astype(jnp.float32),
                      wd.astype(bf).astype(jnp.float32), bd,
                      wt.astype(bf).astype(jnp.float32), bt)
    assert jnp.allclose(out, ref_q, atol=2e-3, rtol=2e-3), (out, ref_q)

    # Loose check vs the full-f32 reference (bf16 streaming bounds the error).
    ref = reference(drug, target, wd, bd, wt, bt)
    assert jnp.allclose(out, ref, atol=2e-2, rtol=2e-2), (out, ref)

    # Multi-tile path: grid >= 2 (v7x megacore split) + a partial edge block.
    B2 = 300
    drug2 = jax.random.normal(jax.random.PRNGKey(1), (B2, DRUG), dtype=jnp.float32)
    target2 = jax.random.normal(jax.random.PRNGKey(2), (B2, TARGET), dtype=jnp.float32)
    out2 = jax.block_until_ready(simple_coembedding(drug2, target2, wd, bd, wt, bt))
    ref2 = reference(drug2, target2, wd, bd, wt, bt)
    assert out2.shape == (B2,)
    assert jnp.allclose(out2, ref2, atol=2e-2, rtol=2e-2)

    print("KERNEL_OK")
</pallas_src>

<mosaic_0001>
module attributes {stable_mosaic.version = 11 : i64} {
  func.func @coembed_cosine_kernel(%arg0: i32, %arg1: memref<128x32xbf16, #tpu.memory_space<vmem>>, %arg2: memref<128x16xbf16, #tpu.memory_space<vmem>>, %arg3: memref<64x32xbf16, #tpu.memory_space<vmem>>, %arg4: memref<64x16xbf16, #tpu.memory_space<vmem>>, %arg5: memref<64x1xf32, #tpu.memory_space<vmem>>, %arg6: memref<64x1xf32, #tpu.memory_space<vmem>>, %arg7: memref<1x128xf32, #tpu.memory_space<vmem>>) attributes {dimension_semantics = [#tpu.dimension_semantics<parallel>], iteration_bounds = array<i64: 1>, scalar_prefetch = 0 : i64, scratch_operands = 0 : i64, tpu.core_type = #tpu.core_type<tc>, window_params = [{transform_indices = @transform_0, window_bounds = array<i64: 128, 32>}, {transform_indices = @transform_1, window_bounds = array<i64: 128, 16>}, {pipeline_mode = #tpu.pipeline_mode<synchronous>, transform_indices = @transform_2, window_bounds = array<i64: 64, 32>}, {pipeline_mode = #tpu.pipeline_mode<synchronous>, transform_indices = @transform_3, window_bounds = array<i64: 64, 16>}, {pipeline_mode = #tpu.pipeline_mode<synchronous>, transform_indices = @transform_4, window_bounds = array<i64: 64, 1>}, {pipeline_mode = #tpu.pipeline_mode<synchronous>, transform_indices = @transform_5, window_bounds = array<i64: 64, 1>}, {transform_indices = @transform_6, window_bounds = array<i64: 1, 128>}]} {
    %c0 = arith.constant 0 : index
    %c0_0 = arith.constant 0 : index
    %0 = vector.load %arg3[%c0, %c0_0] : memref<64x32xbf16, #tpu.memory_space<vmem>>, vector<64x32xbf16>
    %c0_1 = arith.constant 0 : index
    %c0_2 = arith.constant 0 : index
    %1 = vector.load %arg1[%c0_1, %c0_2] : memref<128x32xbf16, #tpu.memory_space<vmem>>, vector<128x32xbf16>
    %cst = arith.constant dense<0.000000e+00> : vector<64x128xf32>
    %2 = tpu.matmul %0, %1, %cst {dimension_numbers = #tpu.dot_dimension_numbers<[1], [1], [0], [0], [0, 0, 1, 0], [], []>} : vector<64x32xbf16>, vector<128x32xbf16>, vector<64x128xf32> -> vector<64x128xf32>
    %c0_3 = arith.constant 0 : index
    %c0_4 = arith.constant 0 : index
    %3 = vector.load %arg4[%c0_3, %c0_4] : memref<64x16xbf16, #tpu.memory_space<vmem>>, vector<64x16xbf16>
    %c0_5 = arith.constant 0 : index
    %c0_6 = arith.constant 0 : index
    %4 = vector.load %arg2[%c0_5, %c0_6] : memref<128x16xbf16, #tpu.memory_space<vmem>>, vector<128x16xbf16>
    %cst_7 = arith.constant dense<0.000000e+00> : vector<64x128xf32>
    %5 = tpu.matmul %3, %4, %cst_7 {dimension_numbers = #tpu.dot_dimension_numbers<[1], [1], [0], [0], [0, 0, 1, 0], [], []>} : vector<64x16xbf16>, vector<128x16xbf16>, vector<64x128xf32> -> vector<64x128xf32>
    %c0_8 = arith.constant 0 : index
    %c0_9 = arith.constant 0 : index
    %6 = vector.load %arg5[%c0_8, %c0_9] : memref<64x1xf32, #tpu.memory_space<vmem>>, vector<64x1xf32>
    %7 = vector.broadcast %6 : vector<64x1xf32> to vector<64x128xf32>
    %8 = arith.addf %2, %7 : vector<64x128xf32>
    %cst_10 = arith.constant 0.000000e+00 : f32
    %9 = vector.broadcast %cst_10 : f32 to vector<64x128xf32>
    %10 = arith.maximumf %8, %9 : vector<64x128xf32>
    %c0_11 = arith.constant 0 : index
    %c0_12 = arith.constant 0 : index
    %11 = vector.load %arg6[%c0_11, %c0_12] : memref<64x1xf32, #tpu.memory_space<vmem>>, vector<64x1xf32>
    %12 = vector.broadcast %11 : vector<64x1xf32> to vector<64x128xf32>
    %13 = arith.addf %5, %12 : vector<64x128xf32>
    %cst_13 = arith.constant 0.000000e+00 : f32
    %14 = vector.broadcast %cst_13 : f32 to vector<64x128xf32>
    %15 = arith.maximumf %13, %14 : vector<64x128xf32>
    %16 = arith.mulf %10, %15 : vector<64x128xf32>
    %cst_14 = arith.constant dense<0.000000e+00> : vector<128xf32>
    %17 = vector.multi_reduction <add>, %16, %cst_14 [0] : vector<64x128xf32> to vector<128xf32>
    %18 = vector.shape_cast %17 : vector<128xf32> to vector<1x128xf32>
    %19 = arith.mulf %10, %10 : vector<64x128xf32>
    %cst_15 = arith.constant dense<0.000000e+00> : vector<128xf32>
    %20 = vector.multi_reduction <add>, %19, %cst_15 [0] : vector<64x128xf32> to vector<128xf32>
    %21 = vector.shape_cast %20 : vector<128xf32> to vector<1x128xf32>
    %22 = arith.mulf %15, %15 : vector<64x128xf32>
    %cst_16 = arith.constant dense<0.000000e+00> : vector<128xf32>
    %23 = vector.multi_reduction <add>, %22, %cst_16 [0] : vector<64x128xf32> to vector<128xf32>
    %24 = vector.shape_cast %23 : vector<128xf32> to vector<1x128xf32>
    %25 = arith.mulf %21, %24 : vector<1x128xf32>
    %cst_17 = arith.constant 1.000000e-16 : f32
    %26 = vector.broadcast %cst_17 : f32 to vector<1x128xf32>
    %27 = arith.maximumf %25, %26 : vector<1x128xf32>
    %28 = math.rsqrt %27 : vector<1x128xf32>
    %29 = arith.mulf %18, %28 : vector<1x128xf32>
    %c0_18 = arith.constant 0 : index
    %c0_19 = arith.constant 0 : index
    %30 = vector.load %arg7[%c0_18, %c0_19] : memref<1x128xf32, #tpu.memory_space<vmem>>, vector<1x128xf32>
    tpu.vector_store %arg7[%c0_18, %c0_19], %29 {strides = array<i32>} : memref<1x128xf32, #tpu.memory_space<vmem>>, vector<1x128xf32>,
    return
  }
  func.func @transform_0(%arg0: i32) -> (i32, i32) {
    %c0_i32 = arith.constant 0 : i32
    %c0_i32_0 = arith.constant 0 : i32
    return %arg0, %c0_i32 : i32, i32
  }
  func.func @transform_1(%arg0: i32) -> (i32, i32) {
    %c0_i32 = arith.constant 0 : i32
    %c0_i32_0 = arith.constant 0 : i32
    return %arg0, %c0_i32 : i32, i32
  }
  func.func @transform_2(%arg0: i32) -> (i32, i32) {
    %c0_i32 = arith.constant 0 : i32
    %c0_i32_0 = arith.constant 0 : i32
    %c0_i32_1 = arith.constant 0 : i32
    return %c0_i32, %c0_i32_0 : i32, i32
  }
  func.func @transform_3(%arg0: i32) -> (i32, i32) {
    %c0_i32 = arith.constant 0 : i32
    %c0_i32_0 = arith.constant 0 : i32
    %c0_i32_1 = arith.constant 0 : i32
    return %c0_i32, %c0_i32_0 : i32, i32
  }
  func.func @transform_4(%arg0: i32) -> (i32, i32) {
    %c0_i32 = arith.constant 0 : i32
    %c0_i32_0 = arith.constant 0 : i32
    %c0_i32_1 = arith.constant 0 : i32
    return %c0_i32, %c0_i32_0 : i32, i32
  }
  func.func @transform_5(%arg0: i32) -> (i32, i32) {
    %c0_i32 = arith.constant 0 : i32
    %c0_i32_0 = arith.constant 0 : i32
    %c0_i32_1 = arith.constant 0 : i32
    return %c0_i32, %c0_i32_0 : i32, i32
  }
  func.func @transform_6(%arg0: i32) -> (i32, i32) {
    %c0_i32 = arith.constant 0 : i32
    %c0_i32_0 = arith.constant 0 : i32
    return %c0_i32, %arg0 : i32, i32
  }
}

</mosaic_0001>

<llo_original>
// kernel: tpu_custom_call.1
$region0: #{tpu_custom_call.1}
  #allocation0 [shape = 'u32[]', space=smem, size = 0x4, offset = 0x4, fixed_abs, tag = 'smem constant byte address 0x4 - core index']
  #allocation1 [shape = 'u32[144,128]{1,0:T(1,128)}', space=vmem, size = 0x12000, scoped, tag = 'internal scratch']
  %s0 = inlined_call_operand.vmem [shape: bf16[128,32], index: 0, kind: input, shape index: {}]
  %s1 = inlined_call_operand.vmem [shape: bf16[128,16], index: 1, kind: input, shape index: {}]
  %s2 = inlined_call_operand.vmem [shape: bf16[64,32], index: 2, kind: input, shape index: {}]
  %s3 = inlined_call_operand.vmem [shape: bf16[64,16], index: 3, kind: input, shape index: {}]
  %s4 = inlined_call_operand.vmem [shape: f32[64,1], index: 4, kind: input, shape index: {}]
  %s5 = inlined_call_operand.vmem [shape: f32[64,1], index: 5, kind: input, shape index: {}]
  %s6 = inlined_call_operand.hbm [shape: f32[1,128], index: 6, kind: output, shape index: {}]
  %s7 = sld [smem:[#allocation0]]
  $region34: #{tpu_custom_call.1} parent=0
    _
  %s9 = ssub.s32 1, %s7
  %s10 = scalar_select 0, %s9, %s7
  $region1: #{tpu_custom_call.1} parent=0
    #allocation2 [shape = 'u8[512]{0}', space=vmem, size = 0x400, scoped, tag = 'output window, operand 0, single buffered']
    #allocation3 [shape = 's32[1]{0}', space=sflag, size = 0x4, scoped, tag = 'scoped memory for tpu_custom_call.1']
    %11 = vsyncpa [#allocation3], 0
    // Predicated region
    $region2: #{tpu_custom_call.1} parent=1 // pred_check
      _
    $region3: #{tpu_custom_call.1} parent=1 // pred_check_branch
      %13 = sbr.rel (0) target = $region5
    $region4: #{tpu_custom_call.1} parent=1 // pred_region
      _
    $region5: #{tpu_custom_call.1} parent=1 // pred_fallthru
      _
    // Predicated region
    $region6: #{tpu_custom_call.1} parent=1 // pred_check
      _
    $region7: #{tpu_custom_call.1} parent=1 // pred_check_branch
      %15 = sbr.rel (0) target = $region9
    $region8: #{tpu_custom_call.1} parent=1 // pred_region
      _
    $region9: #{tpu_custom_call.1} parent=1 // pred_fallthru
      _
    // Predicated region
    $region10: #{tpu_custom_call.1} parent=1 // pred_check
      _
    $region11: #{tpu_custom_call.1} parent=1 // pred_check_branch
      %17 = sbr.rel (0) target = $region13
    $region12: #{tpu_custom_call.1} parent=1 // pred_region
      _
    $region13: #{tpu_custom_call.1} parent=1 // pred_fallthru
      _
    // Predicated region
    $region14: #{tpu_custom_call.1} parent=1 // pred_check
      _
    $region15: #{tpu_custom_call.1} parent=1 // pred_check_branch
      %19 = sbr.rel (0) target = $region17
    $region16: #{tpu_custom_call.1} parent=1 // pred_region
      _
    $region17: #{tpu_custom_call.1} parent=1 // pred_fallthru
      _
    // Predicated region
    $region18: #{tpu_custom_call.1} parent=1 // pred_check
      _
    $region19: #{tpu_custom_call.1} parent=1 // pred_check_branch
      %21 = sbr.rel (0) target = $region21
    $region20: #{tpu_custom_call.1} parent=1 // pred_region
      _
    $region21: #{tpu_custom_call.1} parent=1 // pred_fallthru
      _
    // Predicated region
    $region22: #{tpu_custom_call.1} parent=1 // pred_check
      _
    $region23: #{tpu_custom_call.1} parent=1 // pred_check_branch
      %23 = sbr.rel (0) target = $region25
    $region24: #{tpu_custom_call.1} parent=1 // pred_region
      _
    $region25: #{tpu_custom_call.1} parent=1 // pred_fallthru
      _
    %v25 = vld [vmem:[%s2] sm:$0xf]
    %v26 = vld [vmem:[%s2 + $0x4] sm:$0xf]
    %v27 = vld [vmem:[%s2 + $0x8] sm:$0xf]
    %v28 = vld [vmem:[%s2 + $0xc] sm:$0xf]
    %v29 = vld [vmem:[%s2 + $0x10] sm:$0xf]
    %v30 = vld [vmem:[%s2 + $0x14] sm:$0xf]
    %v31 = vld [vmem:[%s2 + $0x18] sm:$0xf]
    %v32 = vld [vmem:[%s2 + $0x1c] sm:$0xf]
    %v33 = vld [vmem:[%s0] sm:$0xf]
    %v34 = vld [vmem:[%s0 + $0x4] sm:$0xf]
    %v35 = vld [vmem:[%s0 + $0x8] sm:$0xf]
    %v36 = vld [vmem:[%s0 + $0xc] sm:$0xf]
    %v37 = vld [vmem:[%s0 + $0x10] sm:$0xf]
    %v38 = vld [vmem:[%s0 + $0x14] sm:$0xf]
    %v39 = vld [vmem:[%s0 + $0x18] sm:$0xf]
    %v40 = vld [vmem:[%s0 + $0x1c] sm:$0xf]
    %v41 = vld [vmem:[%s0 + $0x20] sm:$0xf]
    %v42 = vld [vmem:[%s0 + $0x24] sm:$0xf]
    %v43 = vld [vmem:[%s0 + $0x28] sm:$0xf]
    %v44 = vld [vmem:[%s0 + $0x2c] sm:$0xf]
    %v45 = vld [vmem:[%s0 + $0x30] sm:$0xf]
    %v46 = vld [vmem:[%s0 + $0x34] sm:$0xf]
    %v47 = vld [vmem:[%s0 + $0x38] sm:$0xf]
    %v48 = vld [vmem:[%s0 + $0x3c] sm:$0xf]
    %v49 = vld [vmem:[%s3] sm:$0xf]
    %v50 = vld [vmem:[%s3 + $0x4] sm:$0xf]
    %v51 = vld [vmem:[%s3 + $0x8] sm:$0xf]
    %v52 = vld [vmem:[%s3 + $0xc] sm:$0xf]
    %v53 = vld [vmem:[%s3 + $0x10] sm:$0xf]
    %v54 = vld [vmem:[%s3 + $0x14] sm:$0xf]
    %v55 = vld [vmem:[%s3 + $0x18] sm:$0xf]
    %v56 = vld [vmem:[%s3 + $0x1c] sm:$0xf]
    %v57 = vld [vmem:[%s1] sm:$0xf]
    %v58 = vld [vmem:[%s1 + $0x4] sm:$0xf]
    %v59 = vld [vmem:[%s1 + $0x8] sm:$0xf]
    %v60 = vld [vmem:[%s1 + $0xc] sm:$0xf]
    %v61 = vld [vmem:[%s1 + $0x10] sm:$0xf]
    %v62 = vld [vmem:[%s1 + $0x14] sm:$0xf]
    %v63 = vld [vmem:[%s1 + $0x18] sm:$0xf]
    %v64 = vld [vmem:[%s1 + $0x1c] sm:$0xf]
    %v65 = vld [vmem:[%s1 + $0x20] sm:$0xf]
    %v66 = vld [vmem:[%s1 + $0x24] sm:$0xf]
    %v67 = vld [vmem:[%s1 + $0x28] sm:$0xf]
    %v68 = vld [vmem:[%s1 + $0x2c] sm:$0xf]
    %v69 = vld [vmem:[%s1 + $0x30] sm:$0xf]
    %v70 = vld [vmem:[%s1 + $0x34] sm:$0xf]
    %v71 = vld [vmem:[%s1 + $0x38] sm:$0xf]
    %v72 = vld [vmem:[%s1 + $0x3c] sm:$0xf]
    %v73 = vld [vmem:[%s4] sm:$0xff]
    %v74 = vld [vmem:[%s4 + $0x8] sm:$0xff]
    %v75 = vld [vmem:[%s4 + $0x10] sm:$0xff]
    %v76 = vld [vmem:[%s4 + $0x18] sm:$0xff]
    %v77 = vld [vmem:[%s4 + $0x20] sm:$0xff]
    %v78 = vld [vmem:[%s4 + $0x28] sm:$0xff]
    %v79 = vld [vmem:[%s4 + $0x30] sm:$0xff]
    %v80 = vld [vmem:[%s4 + $0x38] sm:$0xff]
    %82 = vset.pattern.permute.xlu0 0
    %83 = vperm.xlu0 %82, %v73
    %v84 = vpop.permute.xlu0 %83
    %87 = vset.pattern.permute.xlu0 0
    %88 = vperm.xlu0 %87, %v74
    %v89 = vpop.permute.xlu0 %88
    %92 = vset.pattern.permute.xlu0 0
    %93 = vperm.xlu0 %92, %v75
    %v94 = vpop.permute.xlu0 %93
    %97 = vset.pattern.permute.xlu0 0
    %98 = vperm.xlu0 %97, %v76
    %v99 = vpop.permute.xlu0 %98
    %102 = vset.pattern.permute.xlu0 0
    %103 = vperm.xlu0 %102, %v77
    %v104 = vpop.permute.xlu0 %103
    %107 = vset.pattern.permute.xlu0 0
    %108 = vperm.xlu0 %107, %v78
    %v109 = vpop.permute.xlu0 %108
    %112 = vset.pattern.permute.xlu0 0
    %113 = vperm.xlu0 %112, %v79
    %v114 = vpop.permute.xlu0 %113
    %117 = vset.pattern.permute.xlu0 0
    %118 = vperm.xlu0 %117, %v80
    %v119 = vpop.permute.xlu0 %118
    %v129 = vunpack.c.l.b16 %v25
    %v130 = vunpack.c.l.b16 %v26
    %v131 = vunpack.c.l.b16 %v27
    %v132 = vunpack.c.l.b16 %v28
    %v133 = vunpack.c.l.b16 %v29
    %v134 = vunpack.c.l.b16 %v30
    %v135 = vunpack.c.l.b16 %v31
    %v136 = vunpack.c.l.b16 %v32
    %v137 = vpack.c.b16 %v130, %v129
    %v138 = vpack.c.b16 %v132, %v131
    %v139 = vpack.c.b16 %v134, %v133
    %v140 = vpack.c.b16 %v136, %v135
    %v157 = vunpack.c.l.b16 %v33
    %v158 = vunpack.c.l.b16 %v34
    %v159 = vunpack.c.l.b16 %v35
    %v160 = vunpack.c.l.b16 %v36
    %v161 = vunpack.c.l.b16 %v37
    %v162 = vunpack.c.l.b16 %v38
    %v163 = vunpack.c.l.b16 %v39
    %v164 = vunpack.c.l.b16 %v40
    %v165 = vunpack.c.l.b16 %v41
    %v166 = vunpack.c.l.b16 %v42
    %v167 = vunpack.c.l.b16 %v43
    %v168 = vunpack.c.l.b16 %v44
    %v169 = vunpack.c.l.b16 %v45
    %v170 = vunpack.c.l.b16 %v46
    %v171 = vunpack.c.l.b16 %v47
    %v172 = vunpack.c.l.b16 %v48
    %v173 = vpack.c.b16 %v158, %v157
    %v174 = vpack.c.b16 %v160, %v159
    %v175 = vpack.c.b16 %v162, %v161
    %v176 = vpack.c.b16 %v164, %v163
    %v177 = vpack.c.b16 %v166, %v165
    %v178 = vpack.c.b16 %v168, %v167
    %v179 = vpack.c.b16 %v170, %v169
    %v180 = vpack.c.b16 %v172, %v171
    %vm181 = vcmask 261120
    %v183 = vsel %vm181, %v137, 0
    %v186 = vsel %vm181, %v138, 0
    %v189 = vsel %vm181, %v139, 0
    %v192 = vsel %vm181, %v140, 0
    %v195 = vsel %vm181, %v173, 0
    %v198 = vsel %vm181, %v174, 0
    %v201 = vsel %vm181, %v175, 0
    %v204 = vsel %vm181, %v176, 0
    %v207 = vsel %vm181, %v177, 0
    %v210 = vsel %vm181, %v178, 0
    %v213 = vsel %vm181, %v179, 0
    %v216 = vsel %vm181, %v180, 0
    %218 = vmatprep.subr.bf16.mxu0 0
    %219 = vmatpush1.bf16.xpose.msra.mxu0 %v195
    %220 = vmatprep.subr.bf16.mxu0 0
    %221 = vmatpush1.bf16.xpose.msra.mxu0 %v198
    %222 = vmatprep.subr.bf16.mxu0 0
    %223 = vmatpush1.bf16.xpose.msra.mxu0 %v201
    %224 = vmatprep.subr.bf16.mxu0 0
    %225 = vmatpush1.bf16.xpose.msra.mxu0 %v204
    %226 = vmatprep.subr.bf16.mxu0 0
    %227 = vmatpush1.bf16.xpose.msra.mxu0 %v207
    %228 = vmatprep.subr.bf16.mxu0 0
    %229 = vmatpush1.bf16.xpose.msra.mxu0 %v210
    %230 = vmatprep.subr.bf16.mxu0 0
    %231 = vmatpush1.bf16.xpose.msra.mxu0 %v213
    %232 = vmatprep.subr.bf16.mxu0 0
    %233 = vmatpush1.bf16.xpose.msra.mxu0 %v216
    %234 = vmatprep.subr.bf16.mxu0 0
    %235 = vmatpush1.bf16.xpose.msra.mxu0 0
    %236 = vmatprep.subr.bf16.mxu0 0
    %237 = vmatpush1.bf16.xpose.msra.mxu0 0
    %238 = vmatprep.subr.bf16.mxu0 0
    %239 = vmatpush1.bf16.xpose.msra.mxu0 0
    %240 = vmatprep.subr.bf16.mxu0 0
    %241 = vmatpush1.bf16.xpose.msra.mxu0 0
    %242 = vmatprep.subr.bf16.mxu0 0
    %243 = vmatpush1.bf16.xpose.msra.mxu0 0
    %244 = vmatprep.subr.bf16.mxu0 0
    %245 = vmatpush1.bf16.xpose.msra.mxu0 0
    %246 = vmatprep.subr.bf16.mxu0 0
    %247 = vmatpush1.bf16.xpose.msra.mxu0 0
    %248 = vmatprep.subr.bf16.mxu0 0
    %249 = vmatpush1.bf16.xpose.msra.mxu0 0
    %250 = vmatprep.mubr.bf16.mxu0 0
    %251 = vmatmul.mubr.bf16.gmra.mrb[0].mxu0 %v183
    %v252 = vpop.f32.mrb[0].mxu0
    %v253 = vadd.f32 %v84, %v252
    %v254 = vpop.f32.mrb[0].mxu0
    %v255 = vpop.f32.mrb[0].mxu0
    %v256 = vadd.f32 %v89, %v255
    %v257 = vpop.f32.mrb[0].mxu0
    %258 = vmatprep.mubr.bf16.mxu0 0
    %259 = vmatmul.mubr.bf16.gmra.mrb[0].mxu0 %v186
    %v260 = vpop.f32.mrb[0].mxu0
    %v261 = vadd.f32 %v94, %v260
    %v262 = vpop.f32.mrb[0].mxu0
    %v263 = vpop.f32.mrb[0].mxu0
    %v264 = vadd.f32 %v99, %v263
    %v265 = vpop.f32.mrb[0].mxu0
    %266 = vmatprep.mubr.bf16.mxu0 0
    %267 = vmatmul.mubr.bf16.gmra.mrb[0].mxu0 %v189
    %v268 = vpop.f32.mrb[0].mxu0
    %v269 = vadd.f32 %v104, %v268
    %v270 = vpop.f32.mrb[0].mxu0
    %v271 = vpop.f32.mrb[0].mxu0
    %v272 = vadd.f32 %v109, %v271
    %v273 = vpop.f32.mrb[0].mxu0
    %274 = vmatprep.mubr.bf16.mxu0 0
    %275 = vmatmul.mubr.bf16.gmra.mrb[0].mxu0 %v192
    %v276 = vpop.f32.mrb[0].mxu0
    %v277 = vadd.f32 %v114, %v276
    %v278 = vpop.f32.mrb[0].mxu0
    %v279 = vpop.f32.mrb[0].mxu0
    %v280 = vadd.f32 %v119, %v279
    %v281 = vpop.f32.mrb[0].mxu0
    %282 = vdwg.mxu0
    %v283 = vmax.f32 %v253, 0.0
    %v284 = vmax.f32 %v256, 0.0
    %v285 = vmax.f32 %v261, 0.0
    %v286 = vmax.f32 %v264, 0.0
    %v287 = vmax.f32 %v269, 0.0
    %v288 = vmax.f32 %v272, 0.0
    %v289 = vmax.f32 %v277, 0.0
    %v290 = vmax.f32 %v280, 0.0
    %v291 = vld [vmem:[%s5] sm:$0xff]
    %v292 = vld [vmem:[%s5 + $0x8] sm:$0xff]
    %v293 = vld [vmem:[%s5 + $0x10] sm:$0xff]
    %v294 = vld [vmem:[%s5 + $0x18] sm:$0xff]
    %v295 = vld [vmem:[%s5 + $0x20] sm:$0xff]
    %v296 = vld [vmem:[%s5 + $0x28] sm:$0xff]
    %v297 = vld [vmem:[%s5 + $0x30] sm:$0xff]
    %v298 = vld [vmem:[%s5 + $0x38] sm:$0xff]
    %300 = vset.pattern.permute.xlu0 0
    %301 = vperm.xlu0 %300, %v291
    %v302 = vpop.permute.xlu0 %301
    %305 = vset.pattern.permute.xlu0 0
    %306 = vperm.xlu0 %305, %v292
    %v307 = vpop.permute.xlu0 %306
    %310 = vset.pattern.permute.xlu0 0
    %311 = vperm.xlu0 %310, %v293
    %v312 = vpop.permute.xlu0 %311
    %315 = vset.pattern.permute.xlu0 0
    %316 = vperm.xlu0 %315, %v294
    %v317 = vpop.permute.xlu0 %316
    %320 = vset.pattern.permute.xlu0 0
    %321 = vperm.xlu0 %320, %v295
    %v322 = vpop.permute.xlu0 %321
    %325 = vset.pattern.permute.xlu0 0
    %326 = vperm.xlu0 %325, %v296
    %v327 = vpop.permute.xlu0 %326
    %330 = vset.pattern.permute.xlu0 0
    %331 = vperm.xlu0 %330, %v297
    %v332 = vpop.permute.xlu0 %331
    %335 = vset.pattern.permute.xlu0 0
    %336 = vperm.xlu0 %335, %v298
    %v337 = vpop.permute.xlu0 %336
    %v347 = vunpack.c.l.b16 %v49
    %v348 = vunpack.c.l.b16 %v50
    %v349 = vunpack.c.l.b16 %v51
    %v350 = vunpack.c.l.b16 %v52
    %v351 = vunpack.c.l.b16 %v53
    %v352 = vunpack.c.l.b16 %v54
    %v353 = vunpack.c.l.b16 %v55
    %v354 = vunpack.c.l.b16 %v56
    %v355 = vpack.c.b16 %v348, %v347
    %v356 = vpack.c.b16 %v350, %v349
    %v357 = vpack.c.b16 %v352, %v351
    %v358 = vpack.c.b16 %v354, %v353
    %v375 = vunpack.c.l.b16 %v57
    %v376 = vunpack.c.l.b16 %v58
    %v377 = vunpack.c.l.b16 %v59
    %v378 = vunpack.c.l.b16 %v60
    %v379 = vunpack.c.l.b16 %v61
    %v380 = vunpack.c.l.b16 %v62
    %v381 = vunpack.c.l.b16 %v63
    %v382 = vunpack.c.l.b16 %v64
    %v383 = vunpack.c.l.b16 %v65
    %v384 = vunpack.c.l.b16 %v66
    %v385 = vunpack.c.l.b16 %v67
    %v386 = vunpack.c.l.b16 %v68
    %v387 = vunpack.c.l.b16 %v69
    %v388 = vunpack.c.l.b16 %v70
    %v389 = vunpack.c.l.b16 %v71
    %v390 = vunpack.c.l.b16 %v72
    %v391 = vpack.c.b16 %v376, %v375
    %v392 = vpack.c.b16 %v378, %v377
    %v393 = vpack.c.b16 %v380, %v379
    %v394 = vpack.c.b16 %v382, %v381
    %v395 = vpack.c.b16 %v384, %v383
    %v396 = vpack.c.b16 %v386, %v385
    %v397 = vpack.c.b16 %v388, %v387
    %v398 = vpack.c.b16 %v390, %v389
    %vm399 = vcmask 130048
    %v401 = vsel %vm399, %v355, 0
    %v404 = vsel %vm399, %v356, 0
    %v407 = vsel %vm399, %v357, 0
    %v410 = vsel %vm399, %v358, 0
    %v413 = vsel %vm399, %v391, 0
    %v416 = vsel %vm399, %v392, 0
    %v419 = vsel %vm399, %v393, 0
    %v422 = vsel %vm399, %v394, 0
    %v425 = vsel %vm399, %v395, 0
    %v428 = vsel %vm399, %v396, 0
    %v431 = vsel %vm399, %v397, 0
    %v434 = vsel %vm399, %v398, 0
    %436 = vmatprep.subr.bf16.mxu0 0
    %437 = vmatpush1.bf16.xpose.msra.mxu0 %v413
    %438 = vmatprep.subr.bf16.mxu0 0
    %439 = vmatpush1.bf16.xpose.msra.mxu0 %v416
    %440 = vmatprep.subr.bf16.mxu0 0
    %441 = vmatpush1.bf16.xpose.msra.mxu0 %v419
    %442 = vmatprep.subr.bf16.mxu0 0
    %443 = vmatpush1.bf16.xpose.msra.mxu0 %v422
    %444 = vmatprep.subr.bf16.mxu0 0
    %445 = vmatpush1.bf16.xpose.msra.mxu0 %v425
    %446 = vmatprep.subr.bf16.mxu0 0
    %447 = vmatpush1.bf16.xpose.msra.mxu0 %v428
    %448 = vmatprep.subr.bf16.mxu0 0
    %449 = vmatpush1.bf16.xpose.msra.mxu0 %v431
    %450 = vmatprep.subr.bf16.mxu0 0
    %451 = vmatpush1.bf16.xpose.msra.mxu0 %v434
    %452 = vmatprep.subr.bf16.mxu0 0
    %453 = vmatpush1.bf16.xpose.msra.mxu0 0
    %454 = vmatprep.subr.bf16.mxu0 0
    %455 = vmatpush1.bf16.xpose.msra.mxu0 0
    %456 = vmatprep.subr.bf16.mxu0 0
    %457 = vmatpush1.bf16.xpose.msra.mxu0 0
    %458 = vmatprep.subr.bf16.mxu0 0
    %459 = vmatpush1.bf16.xpose.msra.mxu0 0
    %460 = vmatprep.subr.bf16.mxu0 0
    %461 = vmatpush1.bf16.xpose.msra.mxu0 0
    %462 = vmatprep.subr.bf16.mxu0 0
    %463 = vmatpush1.bf16.xpose.msra.mxu0 0
    %464 = vmatprep.subr.bf16.mxu0 0
    %465 = vmatpush1.bf16.xpose.msra.mxu0 0
    %466 = vmatprep.subr.bf16.mxu0 0
    %467 = vmatpush1.bf16.xpose.msra.mxu0 0
    %468 = vmatprep.mubr.bf16.mxu0 0
    %469 = vmatmul.mubr.bf16.gmra.mrb[0].mxu0 %v401
    %v470 = vpop.f32.mrb[0].mxu0
    %v471 = vadd.f32 %v302, %v470
    %v472 = vpop.f32.mrb[0].mxu0
    %v473 = vpop.f32.mrb[0].mxu0
    %v474 = vadd.f32 %v307, %v473
    %v475 = vpop.f32.mrb[0].mxu0
    %476 = vmatprep.mubr.bf16.mxu0 0
    %477 = vmatmul.mubr.bf16.gmra.mrb[0].mxu0 %v404
    %v478 = vpop.f32.mrb[0].mxu0
    %v479 = vadd.f32 %v312, %v478
    %v480 = vpop.f32.mrb[0].mxu0
    %v481 = vpop.f32.mrb[0].mxu0
    %v482 = vadd.f32 %v317, %v481
    %v483 = vpop.f32.mrb[0].mxu0
    %484 = vmatprep.mubr.bf16.mxu0 0
    %485 = vmatmul.mubr.bf16.gmra.mrb[0].mxu0 %v407
    %v486 = vpop.f32.mrb[0].mxu0
    %v487 = vadd.f32 %v322, %v486
    %v488 = vpop.f32.mrb[0].mxu0
    %v489 = vpop.f32.mrb[0].mxu0
    %v490 = vadd.f32 %v327, %v489
    %v491 = vpop.f32.mrb[0].mxu0
    %492 = vmatprep.mubr.bf16.mxu0 0
    %493 = vmatmul.mubr.bf16.gmra.mrb[0].mxu0 %v410
    %v494 = vpop.f32.mrb[0].mxu0
    %v495 = vadd.f32 %v332, %v494
    %v496 = vpop.f32.mrb[0].mxu0
    %v497 = vpop.f32.mrb[0].mxu0
    %v498 = vadd.f32 %v337, %v497
    %v499 = vpop.f32.mrb[0].mxu0
    %500 = vdwg.mxu0
    %v501 = vmax.f32 %v471, 0.0
    %v502 = vmax.f32 %v474, 0.0
    %v503 = vmax.f32 %v479, 0.0
    %v504 = vmax.f32 %v482, 0.0
    %v505 = vmax.f32 %v487, 0.0
    %v506 = vmax.f32 %v490, 0.0
    %v507 = vmax.f32 %v495, 0.0
    %v508 = vmax.f32 %v498, 0.0
    %v509 = vmul.f32 %v283, %v501
    %v510 = vmul.f32 %v284, %v502
    %v511 = vmul.f32 %v285, %v503
    %v512 = vmul.f32 %v286, %v504
    %v513 = vmul.f32 %v287, %v505
    %v514 = vmul.f32 %v288, %v506
    %v515 = vmul.f32 %v289, %v507
    %v516 = vmul.f32 %v290, %v508
    %v517 = vadd.f32 %v509, %v510
    %v518 = vadd.f32 %v517, %v511
    %v519 = vadd.f32 %v518, %v512
    %v520 = vadd.f32 %v519, %v513
    %v521 = vadd.f32 %v520, %v514
    %v522 = vadd.f32 %v521, %v515
    %v523 = vadd.f32 %v522, %v516
    %v524 = vrot.slane %v523, 4
    %v525 = vadd.f32 %v523, %v524
    %v526 = vrot.slane %v525, 2
    %v527 = vadd.f32 %v525, %v526
    %v528 = vrot.slane %v527, 1
    %v529 = vadd.f32 %v527, %v528
    %v530 = vmul.f32 %v283, %v283
    %v531 = vmul.f32 %v284, %v284
    %v532 = vmul.f32 %v285, %v285
    %v533 = vmul.f32 %v286, %v286
    %v534 = vmul.f32 %v287, %v287
    %v535 = vmul.f32 %v288, %v288
    %v536 = vmul.f32 %v289, %v289
    %v537 = vmul.f32 %v290, %v290
    %v538 = vadd.f32 %v530, %v531
    %v539 = vadd.f32 %v538, %v532
    %v540 = vadd.f32 %v539, %v533
    %v541 = vadd.f32 %v540, %v534
    %v542 = vadd.f32 %v541, %v535
    %v543 = vadd.f32 %v542, %v536
    %v544 = vadd.f32 %v543, %v537
    %v545 = vrot.slane %v544, 4
    %v546 = vadd.f32 %v544, %v545
    %v547 = vrot.slane %v546, 2
    %v548 = vadd.f32 %v546, %v547
    %v549 = vrot.slane %v548, 1
    %v550 = vadd.f32 %v548, %v549
    %v551 = vmul.f32 %v501, %v501
    %v552 = vmul.f32 %v502, %v502
    %v553 = vmul.f32 %v503, %v503
    %v554 = vmul.f32 %v504, %v504
    %v555 = vmul.f32 %v505, %v505
    %v556 = vmul.f32 %v506, %v506
    %v557 = vmul.f32 %v507, %v507
    %v558 = vmul.f32 %v508, %v508
    %v559 = vadd.f32 %v551, %v552
    %v560 = vadd.f32 %v559, %v553
    %v561 = vadd.f32 %v560, %v554
    %v562 = vadd.f32 %v561, %v555
    %v563 = vadd.f32 %v562, %v556
    %v564 = vadd.f32 %v563, %v557
    %v565 = vadd.f32 %v564, %v558
    %v566 = vrot.slane %v565, 4
    %v567 = vadd.f32 %v565, %v566
    %v568 = vrot.slane %v567, 2
    %v569 = vadd.f32 %v567, %v568
    %v570 = vrot.slane %v569, 1
    %v571 = vadd.f32 %v569, %v570
    %v572 = vmul.f32 %v550, %v571
    %v573 = vmax.f32 %v572, 1e-16
    %v574 = vrsqrt.pop %v573
    %v575 = vmul.f32 %v529, %v574
    %576 = vst [vmem:[#allocation2] sm:$0x1] %v575
    // Predicated region
    $region26: #{tpu_custom_call.1} parent=1 // pred_check
      _
    $region27: #{tpu_custom_call.1} parent=1 // pred_check_branch
      %578 = sbr.rel (0) target = $region29
    $region28: #{tpu_custom_call.1} parent=1 // pred_region
      %s580 = ssub.s32 16, 16
      %581 = vsyncadd [#allocation3], %s580
      %s583 = sshll.u32 [#allocation2], 4
      %s584 = int_to_ptr.vmem [resolvable:$true] %s583
      %586 = dma.vmem_to_hbm [thread:$0]  %s584, 16, %s6, [#allocation3]
    $region29: #{tpu_custom_call.1} parent=1 // pred_fallthru
      _
    // Predicated region
    $region30: #{tpu_custom_call.1} parent=1 // pred_check
      _
    $region31: #{tpu_custom_call.1} parent=1 // pred_check_branch
      %588 = sbr.rel (0) target = $region33
    $region32: #{tpu_custom_call.1} parent=1 // pred_region
      %589 = dma.done [#allocation3], 16
    $region33: #{tpu_custom_call.1} parent=1 // pred_fallthru
      _
    %590 = vsyncpa [#allocation3], 1

</llo_original>
